<compile_context>
chip_gen: v7x
topology: tpu7x:2x2x1
jax: 0.10.0
libtpu: 0.0.40
codegen_flags: <defaults>
</compile_context>

<pallas_src>
import math

import jax
import jax.numpy as jnp
from jax.experimental import pallas as pl
from jax.experimental.pallas import tpu as pltpu


# ----------------------------------------------------------------------------
# Tiling helpers
# ----------------------------------------------------------------------------
def _pick_row_tile(m, cap=256):
    """Row tile for M-tiled kernels.

    Prefers multiples of 128 (MXU / lane aligned) and guarantees >= 2 grid
    steps whenever the row count allows it so v7x's two TensorCores both get
    work on the 'parallel' axis.
    """
    if m <= cap:
        if m >= 16 and m % 16 == 0:
            return m // 2  # >= 2 parallel grid steps
        return m
    t = (cap // 128) * 128
    return t if t > 0 else max((cap // 8) * 8, 8)


def _pick_group(n, target=64):
    """Segments batched per attention grid step: divisor of n, >= 2 steps."""
    cap = max(1, min(target, n // 2 if n >= 2 else 1))
    g = cap
    while n % g:
        g -= 1
    return g


def _nbytes(shape, dtype):
    sz = 1
    for s in shape:
        sz *= int(s)
    return sz * jnp.dtype(dtype).itemsize


def _vmem_limit(*block_bytes):
    """Explicit scoped-VMEM limit: double-buffered blocks + headroom."""
    need = 2 * sum(block_bytes) + (4 << 20)
    return int(min(max(need, 32 << 20), 128 << 20))


# ----------------------------------------------------------------------------
# Pallas kernels
# ----------------------------------------------------------------------------
def _linear_kernel(x_ref, w_ref, b_ref, o_ref):
    # bf16 operands on the MXU, f32 accumulation; bias added in f32.
    x = x_ref[...].astype(jnp.bfloat16)
    o_ref[...] = (
        jnp.dot(x, w_ref[...], preferred_element_type=jnp.float32) + b_ref[...]
    ).astype(o_ref.dtype)


def linear_pallas(x2d, w, b, row_tile=256):
    """x2d: (M, K) @ w: (K, N) + b: (N,) -> (M, N), tiled over M.

    Weights are pre-cast to bf16 so the resident weight block is half-size.
    """
    M, K = x2d.shape
    N = w.shape[1]
    tm = _pick_row_tile(M, row_tile)
    w16 = w.astype(jnp.bfloat16)
    b1 = b.reshape(1, N).astype(jnp.float32)
    limit = _vmem_limit(
        _nbytes((tm, K), x2d.dtype),
        _nbytes((K, N), jnp.bfloat16),
        _nbytes((1, N), jnp.float32),
        _nbytes((tm, N), x2d.dtype),
    )
    # TODO(synk): for production D, add an N (and K) grid axis over the weight
    # and use pipeline_mode=pl.Buffered(1) on the constant-index weight specs
    # so v7x's 64 MiB VMEM is not double-buffered away.
    return pl.pallas_call(
        _linear_kernel,
        out_shape=jax.ShapeDtypeStruct((M, N), x2d.dtype),
        grid=(pl.cdiv(M, tm),),
        in_specs=[
            pl.BlockSpec((tm, K), lambda i: (i, 0)),
            pl.BlockSpec((K, N), lambda i: (0, 0)),  # weights resident
            pl.BlockSpec((1, N), lambda i: (0, 0)),
        ],
        out_specs=pl.BlockSpec((tm, N), lambda i: (i, 0)),
        compiler_params=pltpu.CompilerParams(
            dimension_semantics=("parallel",), vmem_limit_bytes=limit
        ),
    )(x2d, w16, b1)


def _linear_ln_kernel(x_ref, res_ref, w_ref, b_ref, g_ref, bb_ref, o_ref):
    """o = LayerNorm(res + x @ w + b) * g + bb  (fused matmul epilogue)."""
    x = x_ref[...].astype(jnp.bfloat16)
    y = jnp.dot(x, w_ref[...], preferred_element_type=jnp.float32) + b_ref[...]
    z = y + res_ref[...].astype(jnp.float32)
    mu = jnp.mean(z, axis=-1, keepdims=True)
    var = jnp.mean((z - mu) ** 2, axis=-1, keepdims=True)
    zn = (z - mu) * jax.lax.rsqrt(var + 1e-5)
    o_ref[...] = (zn * g_ref[...] + bb_ref[...]).astype(o_ref.dtype)


def linear_ln_residual_pallas(x2d, res2d, w, b, gamma, beta, row_tile=256):
    """LayerNorm(res + x @ w + b): output projection with fused residual+LN."""
    M, K = x2d.shape
    N = w.shape[1]
    tm = _pick_row_tile(M, row_tile)
    w16 = w.astype(jnp.bfloat16)
    limit = _vmem_limit(
        _nbytes((tm, K), x2d.dtype),
        _nbytes((tm, N), res2d.dtype),
        _nbytes((K, N), jnp.bfloat16),
        3 * _nbytes((1, N), jnp.float32),
        _nbytes((tm, N), x2d.dtype),
    )
    return pl.pallas_call(
        _linear_ln_kernel,
        out_shape=jax.ShapeDtypeStruct((M, N), x2d.dtype),
        grid=(pl.cdiv(M, tm),),
        in_specs=[
            pl.BlockSpec((tm, K), lambda i: (i, 0)),
            pl.BlockSpec((tm, N), lambda i: (i, 0)),
            pl.BlockSpec((K, N), lambda i: (0, 0)),
            pl.BlockSpec((1, N), lambda i: (0, 0)),
            pl.BlockSpec((1, N), lambda i: (0, 0)),
            pl.BlockSpec((1, N), lambda i: (0, 0)),
        ],
        out_specs=pl.BlockSpec((tm, N), lambda i: (i, 0)),
        compiler_params=pltpu.CompilerParams(
            dimension_semantics=("parallel",), vmem_limit_bytes=limit
        ),
    )(
        x2d,
        res2d,
        w16,
        b.reshape(1, N).astype(jnp.float32),
        gamma.reshape(1, N).astype(jnp.float32),
        beta.reshape(1, N).astype(jnp.float32),
    )


def _mlp_ln_kernel(x_ref, w1_ref, b1_ref, w2_ref, b2_ref, g_ref, bb_ref, o_ref):
    """o = LayerNorm(x + GELU(x@w1+b1)@w2+b2) * g + bb (fused MLP block)."""
    x = x_ref[...].astype(jnp.float32)
    h = (
        jnp.dot(x.astype(jnp.bfloat16), w1_ref[...], preferred_element_type=jnp.float32)
        + b1_ref[...]
    )
    # exact (erf) GELU, matching torch.nn.GELU default
    h = 0.5 * h * (1.0 + jax.lax.erf(h * (1.0 / math.sqrt(2.0))))
    y = (
        jnp.dot(h.astype(jnp.bfloat16), w2_ref[...], preferred_element_type=jnp.float32)
        + b2_ref[...]
    )
    z = x + y
    mu = jnp.mean(z, axis=-1, keepdims=True)
    var = jnp.mean((z - mu) ** 2, axis=-1, keepdims=True)
    zn = (z - mu) * jax.lax.rsqrt(var + 1e-5)
    o_ref[...] = (zn * g_ref[...] + bb_ref[...]).astype(o_ref.dtype)


def mlp_ln_residual_pallas(x2d, w1, b1, w2, b2, gamma, beta, row_tile=256):
    """Fused Linear->GELU->Linear with residual + LayerNorm epilogue."""
    M, D = x2d.shape
    H = w1.shape[1]
    tm = _pick_row_tile(M, row_tile)
    w1_16 = w1.astype(jnp.bfloat16)
    w2_16 = w2.astype(jnp.bfloat16)
    limit = _vmem_limit(
        _nbytes((tm, D), x2d.dtype),
        _nbytes((D, H), jnp.bfloat16),
        _nbytes((H, D), jnp.bfloat16),
        _nbytes((1, H), jnp.float32),
        3 * _nbytes((1, D), jnp.float32),
        _nbytes((tm, D), x2d.dtype),
        _nbytes((tm, H), jnp.float32),  # in-kernel hidden activations
    )
    # TODO(synk): for production D (hidden = 4D), K-tile the hidden axis with
    # an accumulator scratch and single-buffer the resident weight specs.
    return pl.pallas_call(
        _mlp_ln_kernel,
        out_shape=jax.ShapeDtypeStruct((M, D), x2d.dtype),
        grid=(pl.cdiv(M, tm),),
        in_specs=[
            pl.BlockSpec((tm, D), lambda i: (i, 0)),
            pl.BlockSpec((D, H), lambda i: (0, 0)),
            pl.BlockSpec((1, H), lambda i: (0, 0)),
            pl.BlockSpec((H, D), lambda i: (0, 0)),
            pl.BlockSpec((1, D), lambda i: (0, 0)),
            pl.BlockSpec((1, D), lambda i: (0, 0)),
            pl.BlockSpec((1, D), lambda i: (0, 0)),
        ],
        out_specs=pl.BlockSpec((tm, D), lambda i: (i, 0)),
        compiler_params=pltpu.CompilerParams(
            dimension_semantics=("parallel",), vmem_limit_bytes=limit
        ),
    )(
        x2d,
        w1_16,
        b1.reshape(1, H).astype(jnp.float32),
        w2_16,
        b2.reshape(1, D).astype(jnp.float32),
        gamma.reshape(1, D).astype(jnp.float32),
        beta.reshape(1, D).astype(jnp.float32),
    )


def _make_attn_kernel(n_heads, head_dim):
    def kernel(mask_ref, q_ref, k_ref, v_ref, o_ref):
        mask = mask_ref[...]  # (S, S) additive causal mask, f32, resident
        q = q_ref[...].astype(jnp.bfloat16)  # (G, S, H*d) lane-dense blocks
        k = k_ref[...].astype(jnp.bfloat16)
        v = v_ref[...].astype(jnp.bfloat16)
        outs = []
        for h in range(n_heads):  # static unroll; heads batched in one block
            lo = h * head_dim
            hi = lo + head_dim
            qh = q[:, :, lo:hi]
            kh = k[:, :, lo:hi]
            vh = v[:, :, lo:hi]
            # 1/sqrt(d) already folded into wq; scores/softmax stay f32.
            s = jnp.einsum("gqd,gkd->gqk", qh, kh, preferred_element_type=jnp.float32)
            s = s + mask[None, :, :]
            m = jnp.max(s, axis=-1, keepdims=True)
            p = jnp.exp(s - m)
            denom = jnp.sum(p, axis=-1, keepdims=True)
            attn = (p * pl.reciprocal(denom, approx=True)).astype(jnp.bfloat16)
            outs.append(
                jnp.einsum("gqk,gkd->gqd", attn, vh, preferred_element_type=jnp.float32)
            )
        o_ref[...] = jnp.concatenate(outs, axis=-1).astype(o_ref.dtype)

    return kernel


def causal_attn_pallas(q, k, v, n_heads, group_target=64):
    """q, k, v: (N, S, n_heads*d) -> (N, S, n_heads*d), causal per segment.

    Lane-dense blocks (last dim = n_heads*d); G segments batched per grid step
    to amortize per-step overhead; additive causal mask is a resident input.
    """
    N, S, HD = q.shape
    d = HD // n_heads
    G = _pick_group(N, group_target)
    row = jax.lax.broadcasted_iota(jnp.int32, (S, S), 0)
    col = jax.lax.broadcasted_iota(jnp.int32, (S, S), 1)
    mask = jnp.where(col <= row, 0.0, -1e30).astype(jnp.float32)

    spec = pl.BlockSpec((G, S, HD), lambda i: (i, 0, 0))
    mspec = pl.BlockSpec((S, S), lambda i: (0, 0))
    limit = _vmem_limit(
        _nbytes((S, S), jnp.float32),
        4 * _nbytes((G, S, HD), q.dtype),
        2 * _nbytes((G, S, S), jnp.float32),  # in-kernel scores / probs
    )
    # TODO(synk): for production S (>= 2048), add a kv grid axis with
    # flash-style online-softmax scratch instead of full SxS scores, and move
    # the dilated per-head segment gather into the index_maps via
    # PrefetchScalarGridSpec (seg_idx in SMEM).
    return pl.pallas_call(
        _make_attn_kernel(n_heads, d),
        out_shape=jax.ShapeDtypeStruct((N, S, HD), q.dtype),
        grid=(N // G,),
        in_specs=[mspec, spec, spec, spec],
        out_specs=spec,
        compiler_params=pltpu.CompilerParams(
            dimension_semantics=("parallel",), vmem_limit_bytes=limit
        ),
    )(mask, q, k, v)


# ----------------------------------------------------------------------------
# Model forward (plain-JAX glue around the Pallas kernels)
# ----------------------------------------------------------------------------
def dilated_attention(q, k, v, n_heads, segment_lengths, dilated_rates):
    """Matches DilatedAttention.forward (without the trailing 1/len divide,
    which is folded into the output projection weight).

    q/k/v: (B, T, D) with heads in the last dim (D = n_heads * head_dim).
    """
    B, T, D = q.shape
    d = D // n_heads
    out = jnp.zeros((B, T, D), q.dtype)
    for S, r in zip(segment_lengths, dilated_rates):
        L = T // S
        Lsel = L // r  # assumes L divisible by r (as the reference does)
        if r == 1:
            # every head uses every segment: pure reshape, no gather/scatter
            xg = causal_attn_pallas(
                q.reshape(B * L, S, D),
                k.reshape(B * L, S, D),
                v.reshape(B * L, S, D),
                n_heads,
            )
            out = out + xg.reshape(B, T, D)
        else:
            # per-head segment offsets: head h uses segments (h % r) :: r
            l_idx = (jnp.arange(n_heads) % r)[None, :] + r * jnp.arange(Lsel)[:, None]
            xs_shape = (B, L, S, n_heads, d)
            idx = jnp.broadcast_to(
                l_idx[None, :, None, :, None], (B, Lsel, S, n_heads, d)
            )

            def gather(x):
                return jnp.take_along_axis(x.reshape(xs_shape), idx, axis=1)

            qg = gather(q).reshape(B * Lsel, S, D)
            kg = gather(k).reshape(B * Lsel, S, D)
            vg = gather(v).reshape(B * Lsel, S, D)
            xg = causal_attn_pallas(qg, kg, vg, n_heads).reshape(
                B, Lsel, S, n_heads, d
            )
            # scatter-ADD the selected segments straight into the accumulator
            bI = jnp.arange(B)[:, None, None, None, None]
            lI = l_idx[None, :, None, :, None]
            sI = jnp.arange(S)[None, None, :, None, None]
            hI = jnp.arange(n_heads)[None, None, None, :, None]
            dI = jnp.arange(d)[None, None, None, None, :]
            out = (
                out.reshape(xs_shape).at[bI, lI, sI, hI, dI].add(xg).reshape(B, T, D)
            )
    return out


def multi_head_dilated_attention(p, x2, B, T, n_heads, segment_lengths, dilated_rates):
    """Returns the un-projected attention output (B*T, D); the output
    projection (+ residual + LN1) is fused into linear_ln_residual_pallas."""
    D = x2.shape[1]
    d = D // n_heads
    wq, bq = p["wq"]
    wk, bk = p["wk"]
    wv, bv = p["wv"]
    scale = 1.0 / math.sqrt(d)  # fold 1/sqrt(d) into the query projection
    wqkv = jnp.concatenate([wq * scale, wk, wv], axis=1)  # (D, 3D)
    bqkv = jnp.concatenate([bq * scale, bk, bv], axis=0)  # (3D,)
    qkv = linear_pallas(x2, wqkv, bqkv)  # (B*T, 3D), x read from HBM once
    q, k, v = jnp.split(qkv, 3, axis=1)
    # heads stay in the last dim: no transposes, all kernel blocks lane-dense
    a = dilated_attention(
        q.reshape(B, T, D),
        k.reshape(B, T, D),
        v.reshape(B, T, D),
        n_heads,
        segment_lengths,
        dilated_rates,
    )
    return a.reshape(B * T, D)


def longnet_layer(p, x, n_heads, segment_lengths, dilated_rates):
    B, T, D = x.shape
    x2 = x.reshape(B * T, D)
    a = multi_head_dilated_attention(
        p, x2, B, T, n_heads, segment_lengths, dilated_rates
    )
    wo, bo = p["wo"]
    # fold the 1/len(dilated_rates) branch averaging into wo (not bo)
    wo_scaled = wo * (1.0 / float(len(dilated_rates)))
    # x = LayerNorm1(x + out_proj(attn)) fused in one kernel
    x2 = linear_ln_residual_pallas(a, x2, wo_scaled, bo, *p["ln1"])
    # x = LayerNorm2(x + MLP(x)) fused in one kernel
    x2 = mlp_ln_residual_pallas(x2, *p["mlp1"], *p["mlp2"], *p["ln2"])
    return x2.reshape(B, T, D)


def longnet_forward(params, tokens, n_heads, segment_lengths, dilated_rates):
    # embedding gather (glue)
    x = jnp.take(params["emb"], tokens, axis=0)  # (B, T, dim)
    # TODO(synk): LongNet.forward in the reference is truncated after moving
    # pos_emb to device; the torchscale xpos relative-position embedding is
    # never applied there, so it is omitted here.
    for lp in params["layers"]:
        x = longnet_layer(lp, x, n_heads, segment_lengths, dilated_rates)
    return x


# ----------------------------------------------------------------------------
# Deterministic parameter init
# ----------------------------------------------------------------------------
def _lin_init(key, din, dout):
    kw, kb = jax.random.split(key)
    bound = 1.0 / math.sqrt(din)
    w = jax.random.uniform(kw, (din, dout), jnp.float32, -bound, bound)
    b = jax.random.uniform(kb, (dout,), jnp.float32, -bound, bound)
    return w, b


def init_params(key, vocab_size, dim, n_layers):
    keys = jax.random.split(key, 1 + n_layers)
    params = {"emb": 0.02 * jax.random.normal(keys[0], (vocab_size, dim), jnp.float32)}
    layers = []
    for i in range(n_layers):
        k = jax.random.split(keys[1 + i], 6)
        layers.append(
            {
                "wq": _lin_init(k[0], dim, dim),
                "wk": _lin_init(k[1], dim, dim),
                "wv": _lin_init(k[2], dim, dim),
                "wo": _lin_init(k[3], dim, dim),
                "mlp1": _lin_init(k[4], dim, 4 * dim),
                "mlp2": _lin_init(k[5], 4 * dim, dim),
                "ln1": (jnp.ones((dim,), jnp.float32), jnp.zeros((dim,), jnp.float32)),
                "ln2": (jnp.ones((dim,), jnp.float32), jnp.zeros((dim,), jnp.float32)),
            }
        )
    params["layers"] = layers
    return params


# ----------------------------------------------------------------------------
if __name__ == "__main__":
    vocab_size = 50
    dim = 32
    n_heads = 4
    segment_lengths = [4, 8]
    dilated_rates = [1, 2]
    n_layers = 2
    B, T = 2, 16

    key = jax.random.PRNGKey(0)
    k_param, k_tok = jax.random.split(key)
    params = init_params(k_param, vocab_size, dim, n_layers)
    tokens = jax.random.randint(k_tok, (B, T), 0, vocab_size, dtype=jnp.int32)

    out = longnet_forward(params, tokens, n_heads, segment_lengths, dilated_rates)
    out = jax.block_until_ready(out)
    assert out.shape == (B, T, dim)
    assert bool(jnp.all(jnp.isfinite(out)))
    print("KERNEL_OK")
</pallas_src>

<mosaic_0001>
module attributes {stable_mosaic.version = 11 : i64} {
  func.func @_linear_kernel(%arg0: i32, %arg1: memref<16x32xf32, #tpu.memory_space<vmem>>, %arg2: memref<32x96xbf16, #tpu.memory_space<vmem>>, %arg3: memref<1x96xf32, #tpu.memory_space<vmem>>, %arg4: memref<16x96xf32, #tpu.memory_space<vmem>>) attributes {dimension_semantics = [#tpu.dimension_semantics<parallel>], iteration_bounds = array<i64: 2>, scalar_prefetch = 0 : i64, scratch_operands = 0 : i64, tpu.core_type = #tpu.core_type<tc>, window_params = [{transform_indices = @transform_0, window_bounds = array<i64: 16, 32>}, {pipeline_mode = #tpu.pipeline_mode<synchronous>, transform_indices = @transform_1, window_bounds = array<i64: 32, 96>}, {pipeline_mode = #tpu.pipeline_mode<synchronous>, transform_indices = @transform_2, window_bounds = array<i64: 1, 96>}, {transform_indices = @transform_3, window_bounds = array<i64: 16, 96>}]} {
    %c0 = arith.constant 0 : index
    %c0_0 = arith.constant 0 : index
    %0 = vector.load %arg1[%c0, %c0_0] : memref<16x32xf32, #tpu.memory_space<vmem>>, vector<16x32xf32>
    %1 = arith.truncf %0 : vector<16x32xf32> to vector<16x32xbf16>
    %c0_1 = arith.constant 0 : index
    %c0_2 = arith.constant 0 : index
    %2 = vector.load %arg2[%c0_1, %c0_2] : memref<32x96xbf16, #tpu.memory_space<vmem>>, vector<32x96xbf16>
    %cst = arith.constant dense<0.000000e+00> : vector<16x96xf32>
    %3 = tpu.matmul %1, %2, %cst {dimension_numbers = #tpu.dot_dimension_numbers<[1], [0], [0], [1], [0, 0, 1, 1], [], []>} : vector<16x32xbf16>, vector<32x96xbf16>, vector<16x96xf32> -> vector<16x96xf32>
    %c0_3 = arith.constant 0 : index
    %c0_4 = arith.constant 0 : index
    %4 = vector.load %arg3[%c0_3, %c0_4] : memref<1x96xf32, #tpu.memory_space<vmem>>, vector<1x96xf32>
    %5 = vector.broadcast %4 : vector<1x96xf32> to vector<16x96xf32>
    %6 = arith.addf %3, %5 : vector<16x96xf32>
    %c0_5 = arith.constant 0 : index
    %c0_6 = arith.constant 0 : index
    %7 = vector.load %arg4[%c0_5, %c0_6] : memref<16x96xf32, #tpu.memory_space<vmem>>, vector<16x96xf32>
    tpu.vector_store %arg4[%c0_5, %c0_6], %6 {strides = array<i32>} : memref<16x96xf32, #tpu.memory_space<vmem>>, vector<16x96xf32>,
    return
  }
  func.func @transform_0(%arg0: i32) -> (i32, i32) {
    %c0_i32 = arith.constant 0 : i32
    %c0_i32_0 = arith.constant 0 : i32
    return %arg0, %c0_i32 : i32, i32
  }
  func.func @transform_1(%arg0: i32) -> (i32, i32) {
    %c0_i32 = arith.constant 0 : i32
    %c0_i32_0 = arith.constant 0 : i32
    %c0_i32_1 = arith.constant 0 : i32
    return %c0_i32, %c0_i32_0 : i32, i32
  }
  func.func @transform_2(%arg0: i32) -> (i32, i32) {
    %c0_i32 = arith.constant 0 : i32
    %c0_i32_0 = arith.constant 0 : i32
    %c0_i32_1 = arith.constant 0 : i32
    return %c0_i32, %c0_i32_0 : i32, i32
  }
  func.func @transform_3(%arg0: i32) -> (i32, i32) {
    %c0_i32 = arith.constant 0 : i32
    %c0_i32_0 = arith.constant 0 : i32
    return %arg0, %c0_i32 : i32, i32
  }
}

</mosaic_0001>

<llo_original>
// kernel: tpu_custom_call.1
$region0: #{tpu_custom_call.1}
  #allocation0 [shape = 'u32[]', space=smem, size = 0x4, offset = 0x4, fixed_abs, tag = 'smem constant byte address 0x4 - core index']
  #allocation1 [shape = 'u32[144,128]{1,0:T(1,128)}', space=vmem, size = 0x12000, scoped, tag = 'internal scratch']
  %s0 = inlined_call_operand.hbm [shape: f32[32,32], index: 0, kind: input, shape index: {}]
  %s1 = inlined_call_operand.hbm [shape: bf16[32,96], index: 1, kind: input, shape index: {}]
  %s2 = inlined_call_operand.vmem [shape: f32[1,96], index: 2, kind: input, shape index: {}]
  %s3 = inlined_call_operand.hbm [shape: f32[32,96], index: 3, kind: output, shape index: {}]
  %s4 = sld [smem:[#allocation0]]
  $region53: #{tpu_custom_call.1} parent=0
    _
  %s6 = ssub.s32 1, %s4
  %s7 = scalar_select 0, %s6, %s4
  $region1: #{tpu_custom_call.1} parent=0
    #allocation2 [shape = 'u8[16384]{0}', space=vmem, size = 0x4000, scoped, tag = 'input window, operand 0']
    #allocation3 [shape = 's32[2]{0}', space=sflag, size = 0x8, scoped, tag = 'scoped memory for tpu_custom_call.1']
    #allocation4 [shape = 's32[2]{0}', space=sflag, size = 0x8, scoped, tag = 'scoped memory for tpu_custom_call.1']
    #allocation5 [shape = 'u8[8192]{0}', space=vmem, size = 0x2000, scoped, tag = 'input window, operand 1, single buffered']
    #allocation6 [shape = 's32[1]{0}', space=sflag, size = 0x4, scoped, tag = 'scoped memory for tpu_custom_call.1']
    #allocation7 [shape = 'u8[16384]{0}', space=vmem, size = 0x4000, scoped, tag = 'output window, operand 0']
    %8 = vsyncpa [#allocation3], 0
    %s9 = scalar_lea.sflag [#allocation3], 1
    %10 = vsyncpa %s9, 0
    %11 = vsyncpa [#allocation6], 0
    %12 = vsyncpa [#allocation4], 0
    %s13 = scalar_lea.sflag [#allocation4], 1
    %14 = vsyncpa %s13, 0
    loop: start=0, step=1, limit=4
    $region2: #{tpu_custom_call.1} parent=1 // loop_pre_header
      _
    $region3: #{tpu_custom_call.1} parent=1 // loop_header
      %s16 = sphi 0, %s20
      %p17 = scmp.ge.s32.totalorder %s16, 4
      %s26 = sphi 0, %s28
      %s29 = sphi 0, %s26
      %s30 = sphi 0, %s29
      %s46 = sphi 0, %s30
      %s50 = sphi 0, %s50
      %s52 = sphi 0, %s50
      %s53 = sphi 0, %s52
      %s67 = sphi 0, %s53
      %s71 = sphi 0, %s71
      %s73 = sphi 0, %s71
      %s74 = sphi 0, %s73
      %s88 = sphi 0, %s74
      %s94 = sphi 0, %s96
      %s97 = sphi 0, %s94
      %s98 = sphi 0, %s97
      %s114 = sphi 0, %s98
    $region4: #{tpu_custom_call.1} parent=1 // loop_header_branch
      %19 = sbr.rel (%p17) target = $region8
    $region5: #{tpu_custom_call.1} parent=1 // loop_body
      %s21 = ssub.s32 %s16, 1
      %s22 = ssub.s32 %s16, 2
      %s23 = sadd.s32 %s16, 1
      %s24 = ssub.s32 %s16, %s23
      %p25 = scmp.eq.s32.totalorder %s24, 0
      %s27 = sadd.s32 %s26, 1
      %s28 = scalar_select %p25, %s26, %s27
      %p31 = pneg %p25
      %p32 = scmp.eq.s32.totalorder %s16, 1
      %p33 = por %p31, %p32
      %p34 = scmp.ne.s32.totalorder %s26, %s29
      %p35 = scmp.eq.s32.totalorder %s16, 0
      %p36 = por %p34, %p35
      %p37 = scmp.ne.s32.totalorder %s26, %s29
      %p38 = scmp.eq.s32.totalorder %s21, 1
      %p39 = por %p37, %p38
      %p40 = scmp.ne.s32.totalorder %s29, %s30
      %p41 = scmp.eq.s32.totalorder %s21, 0
      %p42 = por %p40, %p41
      %p43 = scmp.ne.s32.totalorder %s29, %s30
      %p44 = scmp.eq.s32.totalorder %s22, 1
      %p45 = por %p43, %p44
      %p47 = scmp.ne.s32.totalorder %s30, %s46
      %p48 = scmp.eq.s32.totalorder %s22, 0
      %p49 = por %p47, %p48
      %s51 = sadd.s32 %s50, 1
      %p54 = scmp.eq.s32.totalorder %s16, 1
      %p55 = scmp.ne.s32.totalorder %s50, %s52
      %p56 = scmp.eq.s32.totalorder %s16, 0
      %p57 = por %p55, %p56
      %p58 = scmp.ne.s32.totalorder %s50, %s52
      %p59 = scmp.eq.s32.totalorder %s21, 1
      %p60 = por %p58, %p59
      %p61 = scmp.ne.s32.totalorder %s52, %s53
      %p62 = scmp.eq.s32.totalorder %s21, 0
      %p63 = por %p61, %p62
      %p64 = scmp.ne.s32.totalorder %s52, %s53
      %p65 = scmp.eq.s32.totalorder %s22, 1
      %p66 = por %p64, %p65
      %p68 = scmp.ne.s32.totalorder %s53, %s67
      %p69 = scmp.eq.s32.totalorder %s22, 0
      %p70 = por %p68, %p69
      %s72 = sadd.s32 %s71, 1
      %p75 = scmp.eq.s32.totalorder %s16, 1
      %p76 = scmp.ne.s32.totalorder %s71, %s73
      %p77 = scmp.eq.s32.totalorder %s16, 0
      %p78 = por %p76, %p77
      %p79 = scmp.ne.s32.totalorder %s71, %s73
      %p80 = scmp.eq.s32.totalorder %s21, 1
      %p81 = por %p79, %p80
      %p82 = scmp.ne.s32.totalorder %s73, %s74
      %p83 = scmp.eq.s32.totalorder %s21, 0
      %p84 = por %p82, %p83
      %p85 = scmp.ne.s32.totalorder %s73, %s74
      %p86 = scmp.eq.s32.totalorder %s22, 1
      %p87 = por %p85, %p86
      %p89 = scmp.ne.s32.totalorder %s74, %s88
      %p90 = scmp.eq.s32.totalorder %s22, 0
      %p91 = por %p89, %p90
      %s92 = ssub.s32 %s16, %s23
      %p93 = scmp.eq.s32.totalorder %s92, 0
      %s95 = sadd.s32 %s94, 1
      %s96 = scalar_select %p93, %s94, %s95
      %p99 = pneg %p93
      %p100 = scmp.eq.s32.totalorder %s16, 1
      %p101 = por %p99, %p100
      %p102 = scmp.ne.s32.totalorder %s94, %s97
      %p103 = scmp.eq.s32.totalorder %s16, 0
      %p104 = por %p102, %p103
      %p105 = scmp.ne.s32.totalorder %s94, %s97
      %p106 = scmp.eq.s32.totalorder %s21, 1
      %p107 = por %p105, %p106
      %p108 = scmp.ne.s32.totalorder %s97, %s98
      %p109 = scmp.eq.s32.totalorder %s21, 0
      %p110 = por %p108, %p109
      %p111 = scmp.ne.s32.totalorder %s97, %s98
      %p112 = scmp.eq.s32.totalorder %s22, 1
      %p113 = por %p111, %p112
      %p115 = scmp.ne.s32.totalorder %s98, %s114
      %p116 = scmp.eq.s32.totalorder %s22, 0
      %p117 = por %p115, %p116
      %p118 = scmp.le.s32.totalorder 1, %s16
      %p119 = scmp.lt.s32.totalorder %s16, 3
      %p120 = pnand %p118, %p119
      %p121 = pneg %p120
      // Predicated region
      $region9: #{tpu_custom_call.1} parent=5 // pred_check
        _
      $region10: #{tpu_custom_call.1} parent=5 // pred_check_branch
        %123 = sbr.rel (%p120) target = $region12
      $region11: #{tpu_custom_call.1} parent=5 // pred_region
        %s124 = ssub.s32 %s16, 1
        // Predicated region
        $region13: #{tpu_custom_call.1} parent=11 // pred_check
          %p125 = pneg %p63
        $region14: #{tpu_custom_call.1} parent=11 // pred_check_branch
          %127 = sbr.rel (%p125) target = $region16
        $region15: #{tpu_custom_call.1} parent=11 // pred_region
          %s129 = ssub.s32 256, 256
          %130 = vsyncadd [#allocation6], %s129
          %s131 = sshll.u32 [#allocation5], 4
          %s132 = int_to_ptr.vmem [resolvable:$true] %s131
          %137 = dma.hbm_to_vmem [thread:$0]  %s1, 256, %s132, [#allocation6], 64, 64, 4
        $region16: #{tpu_custom_call.1} parent=11 // pred_fallthru
          _
        // Predicated region
        $region17: #{tpu_custom_call.1} parent=11 // pred_check
          %p138 = pneg %p84
        $region18: #{tpu_custom_call.1} parent=11 // pred_check_branch
          %140 = sbr.rel (%p138) target = $region20
        $region19: #{tpu_custom_call.1} parent=11 // pred_region
          _
        $region20: #{tpu_custom_call.1} parent=11 // pred_fallthru
          _
      $region12: #{tpu_custom_call.1} parent=5 // pred_fallthru
        _
      %p141 = scmp.lt.s32.totalorder %s16, 2
      // Predicated region
      $region21: #{tpu_custom_call.1} parent=5 // pred_check
        %p142 = pneg %p141
      $region22: #{tpu_custom_call.1} parent=5 // pred_check_branch
        %144 = sbr.rel (%p142) target = $region24
      $region23: #{tpu_custom_call.1} parent=5 // pred_region
        // Predicated region
        $region25: #{tpu_custom_call.1} parent=23 // pred_check
          %p145 = pneg %p36
        $region26: #{tpu_custom_call.1} parent=23 // pred_check_branch
          %147 = sbr.rel (%p145) target = $region28
        $region27: #{tpu_custom_call.1} parent=23 // pred_region
          %s148 = sand.u32 %s26, 1
          %s149 = scalar_lea.sflag [#allocation3], %s148
          %s150 = sand.u32 %s26, 1
          %s151 = smul.addr %s150, 16
          %s152 = scalar_lea.vmem [#allocation2], %s151
          %s153 = smul.u32 2, %s16
          %s155 = ssub.s32 256, 256
          %156 = vsyncadd %s149, %s155
          %s157 = smul.addr %s153, 128
          %s158 = scalar_lea.hbm %s0, %s157
          %s159 = sshll.u32 %s152, 4
          %s160 = int_to_ptr.vmem [resolvable:$true] %s159
          %165 = dma.hbm_to_vmem [thread:$0]  %s158, 256, %s160, %s149, 128, 128, 8
        $region28: #{tpu_custom_call.1} parent=23 // pred_fallthru
          _
      $region24: #{tpu_custom_call.1} parent=5 // pred_fallthru
        _
      %p166 = scmp.le.s32.totalorder 1, %s16
      %p167 = scmp.lt.s32.totalorder %s16, 3
      %p168 = pnand %p166, %p167
      %p169 = pneg %p168
      // Predicated region
      $region29: #{tpu_custom_call.1} parent=5 // pred_check
        _
      $region30: #{tpu_custom_call.1} parent=5 // pred_check_branch
        %171 = sbr.rel (%p168) target = $region32
      $region31: #{tpu_custom_call.1} parent=5 // pred_region
        %s172 = ssub.s32 %s16, 1
        %s173 = sand.u32 %s29, 1
        %s174 = scalar_lea.sflag [#allocation3], %s173
        %s175 = sand.u32 %s29, 1
        %s176 = smul.addr %s175, 16
        %s177 = scalar_lea.vmem [#allocation2], %s176
        // Predicated region
        $region33: #{tpu_custom_call.1} parent=31 // pred_check
          %p178 = pneg %p42
        $region34: #{tpu_custom_call.1} parent=31 // pred_check_branch
          %180 = sbr.rel (%p178) target = $region36
        $region35: #{tpu_custom_call.1} parent=31 // pred_region
          %181 = dma.done %s174, 256
        $region36: #{tpu_custom_call.1} parent=31 // pred_fallthru
          _
        // Predicated region
        $region37: #{tpu_custom_call.1} parent=31 // pred_check
          %p182 = pneg %p63
        $region38: #{tpu_custom_call.1} parent=31 // pred_check_branch
          %184 = sbr.rel (%p182) target = $region40
        $region39: #{tpu_custom_call.1} parent=31 // pred_region
          %185 = dma.done [#allocation6], 256
        $region40: #{tpu_custom_call.1} parent=31 // pred_fallthru
          _
        %s186 = sand.u32 %s29, 1
        %s187 = scalar_lea.sflag [#allocation3], %s186
        %s188 = sand.u32 %s29, 1
        %s189 = smul.addr %s188, 16
        %s190 = scalar_lea.vmem [#allocation2], %s189
        %p191 = pneg %p42
        %p192 = pneg %p39
        %p193 = pneg %p63
        %p194 = pneg %p60
        %p195 = pneg %p84
        %p196 = pneg %p81
        %p197 = pneg %p110
        %p198 = pneg %p107
        %s199 = sand.u32 %s97, 1
        %s200 = scalar_lea.sflag [#allocation4], %s199
        %s201 = sand.u32 %s97, 1
        %s202 = smul.addr %s201, 16
        %s203 = scalar_lea.vmem [#allocation7], %s202
        %s204 = smul.u32 2, %s21
        %s205 = smul.u32 2, %s21
        %v207 = vld [vmem:[%s177] sm:$0xff]
        %v208 = vld [vmem:[%s177 + $0x8] sm:$0xff]
        %v209 = vpack.c.bf16 %v208, %v207
        %v210 = vld [vmem:[#allocation5] sm:$0xf]
        %v211 = vld [vmem:[#allocation5 + $0x4] sm:$0xf]
        %v212 = vld [vmem:[#allocation5 + $0x8] sm:$0xf]
        %v213 = vld [vmem:[#allocation5 + $0xc] sm:$0xf]
        %v214 = vld [vmem:[%s2] sm:$0x1]
        %v216 = vlaneseq
        %v217 = vshrl.u32 %v216, 7
        %v218 = vsub.s32 0, %v217
        %v219 = vrot.slane %v214, %v218
        %v225 = vunpack.c.l.b16 %v210
        %v226 = vunpack.c.l.b16 %v211
        %v227 = vunpack.c.l.b16 %v212
        %v228 = vunpack.c.l.b16 %v213
        %v229 = vpack.c.b16 %v226, %v225
        %v230 = vpack.c.b16 %v228, %v227
        %vm233 = vcmask 261120
        %v235 = vsel %vm233, %v209, 0
        %237 = vmatprep.subr.bf16.mxu0 0
        %238 = vmatpush1.bf16.msra.mxu0 %v229
        %239 = vmatprep.subr.bf16.mxu0 0
        %240 = vmatpush1.bf16.msra.mxu0 %v230
        %241 = vmatprep.subr.bf16.mxu0 0
        %242 = vmatpush1.bf16.msra.mxu0 0
        %243 = vmatprep.subr.bf16.mxu0 0
        %244 = vmatpush1.bf16.msra.mxu0 0
        %245 = vmatprep.subr.bf16.mxu0 0
        %246 = vmatpush1.bf16.msra.mxu0 0
        %247 = vmatprep.subr.bf16.mxu0 0
        %248 = vmatpush1.bf16.msra.mxu0 0
        %249 = vmatprep.subr.bf16.mxu0 0
        %250 = vmatpush1.bf16.msra.mxu0 0
        %251 = vmatprep.subr.bf16.mxu0 0
        %252 = vmatpush1.bf16.msra.mxu0 0
        %253 = vmatprep.subr.bf16.mxu0 0
        %254 = vmatpush1.bf16.msra.mxu0 0
        %255 = vmatprep.subr.bf16.mxu0 0
        %256 = vmatpush1.bf16.msra.mxu0 0
        %257 = vmatprep.subr.bf16.mxu0 0
        %258 = vmatpush1.bf16.msra.mxu0 0
        %259 = vmatprep.subr.bf16.mxu0 0
        %260 = vmatpush1.bf16.msra.mxu0 0
        %261 = vmatprep.subr.bf16.mxu0 0
        %262 = vmatpush1.bf16.msra.mxu0 0
        %263 = vmatprep.subr.bf16.mxu0 0
        %264 = vmatpush1.bf16.msra.mxu0 0
        %265 = vmatprep.subr.bf16.mxu0 0
        %266 = vmatpush1.bf16.msra.mxu0 0
        %267 = vmatprep.subr.bf16.mxu0 0
        %268 = vmatpush1.bf16.msra.mxu0 0
        %269 = vmatprep.mubr.bf16.mxu0 0
        %270 = vmatmul.mubr.bf16.gmra.mrb[0].mxu0 %v235
        %v271 = vpop.f32.mrb[0].mxu0
        %v272 = vadd.f32 %v219, %v271
        %v273 = vpop.f32.mrb[0].mxu0
        %v274 = vpop.f32.mrb[0].mxu0
        %v275 = vadd.f32 %v219, %v274
        %v276 = vpop.f32.mrb[0].mxu0
        %277 = vdwg.mxu0
        %vm278 = vcmask 785408
        %279 = vst.msk [vmem:[%s203] sm:$0xff] %vm278, %v272
        %280 = vst.msk [vmem:[%s203 + $0x8] sm:$0xff] %vm278, %v275
        %s281 = sand.u32 %s97, 1
        %s282 = scalar_lea.sflag [#allocation4], %s281
        %s283 = sand.u32 %s97, 1
        %s284 = smul.addr %s283, 16
        %s285 = scalar_lea.vmem [#allocation7], %s284
        // Predicated region
        $region41: #{tpu_custom_call.1} parent=31 // pred_check
          %p286 = pneg %p107
        $region42: #{tpu_custom_call.1} parent=31 // pred_check_branch
          %288 = sbr.rel (%p286) target = $region44
        $region43: #{tpu_custom_call.1} parent=31 // pred_region
          %s289 = smul.u32 2, %s21
          %s291 = ssub.s32 256, 256
          %292 = vsyncadd %s282, %s291
          %s293 = smul.addr %s289, 128
          %s294 = scalar_lea.hbm %s3, %s293
          %s295 = sshll.u32 %s285, 4
          %s296 = int_to_ptr.vmem [resolvable:$true] %s295
          %301 = dma.vmem_to_hbm [thread:$0]  %s296, 256, %s294, %s282, 128, 128, 8
        $region44: #{tpu_custom_call.1} parent=31 // pred_fallthru
          _
      $region32: #{tpu_custom_call.1} parent=5 // pred_fallthru
        _
      %p302 = scmp.le.s32.totalorder 2, %s16
      // Predicated region
      $region45: #{tpu_custom_call.1} parent=5 // pred_check
        %p303 = pneg %p302
      $region46: #{tpu_custom_call.1} parent=5 // pred_check_branch
        %305 = sbr.rel (%p303) target = $region48
      $region47: #{tpu_custom_call.1} parent=5 // pred_region
        %s306 = ssub.s32 %s16, 2
        // Predicated region
        $region49: #{tpu_custom_call.1} parent=47 // pred_check
          %p307 = pneg %p113
        $region50: #{tpu_custom_call.1} parent=47 // pred_check_branch
          %309 = sbr.rel (%p307) target = $region52
        $region51: #{tpu_custom_call.1} parent=47 // pred_region
          %s310 = sand.u32 %s98, 1
          %s311 = scalar_lea.sflag [#allocation4], %s310
          %s312 = sand.u32 %s98, 1
          %s313 = smul.addr %s312, 16
          %s314 = scalar_lea.vmem [#allocation7], %s313
          %315 = dma.done %s311, 256
        $region52: #{tpu_custom_call.1} parent=47 // pred_fallthru
          _
      $region48: #{tpu_custom_call.1} parent=5 // pred_fallthru
        _
    $region6: #{tpu_custom_call.1} parent=1 // loop_footer
      %s20 = sadd.s32 1, %s16
    $region7: #{tpu_custom_call.1} parent=1 // loop_footer_branch
      %15 = sbr.rel target = $region3
    $region8: #{tpu_custom_call.1} parent=1 // loop_exit
      _
    %316 = vsyncpa [#allocation3], 1
    %s317 = scalar_lea.sflag [#allocation3], 1
    %318 = vsyncpa %s317, 1
    %319 = vsyncpa [#allocation6], 1
    %320 = vsyncpa [#allocation4], 1
    %s321 = scalar_lea.sflag [#allocation4], 1
    %322 = vsyncpa %s321, 1

</llo_original>
